<compile_context>
chip_gen: v6e
topology: v6e:2x2x1
jax: 0.10.0
libtpu: 0.0.40
codegen_flags: <defaults>
</compile_context>

<pallas_src>
import math

import jax
import jax.numpy as jnp
from jax.experimental import pallas as pl
from jax.experimental.pallas import tpu as pltpu


def _pick_block(dim, cap, aligns):
    """Largest block <= cap that divides `dim`, preferring coarser alignments.
    Falls back to the full dimension (full-extent blocks are always legal)."""
    if dim <= cap:
        return dim
    for align in aligns:
        b = (cap // align) * align
        while b >= align:
            if dim % b == 0:
                return b
            b -= align
    return dim


def _lin_var_unif_kernel(x_ref, w_ref, eps_ref, b_ref, o_ref):
    """One (i, j, k) grid step: o[i,j] += x[i,k] @ (W[j,k] * eps[j,k]).T."""
    k = pl.program_id(2)

    @pl.when(k == 0)
    def _init():
        o_ref[...] = jnp.zeros_like(o_ref)

    # Perturb the bf16 weight tile with the f32 eps tile (promotes to f32),
    # then downcast both MXU operands to bf16; accumulate in f32.
    w_eff = (w_ref[...] * eps_ref[...]).astype(jnp.bfloat16)
    o_ref[...] += jax.lax.dot_general(
        x_ref[...], w_eff,
        dimension_numbers=(((1,), (1,)), ((), ())),  # NT: contract last dims
        preferred_element_type=jnp.float32,
    )

    @pl.when(k == pl.num_programs(2) - 1)
    def _finalize():
        o_ref[...] += b_ref[...]


def linear_variance_unif(x, W, bias, key, *, rounding=0, return_eps=False,
                         bm=512, bn=512, bk=1024):
    """y = x @ (W * eps).T + bias with eps ~ U(0,1)-0.5 (optionally rounded).

    x: (M, K) activations, W: (N, K) weight, bias: (1, N) or None,
    key: jax PRNG key used to draw eps.
    """
    M, K = x.shape
    N, Kw = W.shape
    assert K == Kw, (x.shape, W.shape)
    out_dtype = x.dtype

    # eps drawn once on the weight shape (wrapper-side; interpret/CPU safe).
    eps = jax.random.uniform(key, (N, K), jnp.float32) - 0.5
    if rounding:
        eps = jnp.round(eps * rounding) * (1.0 / rounding)

    if bias is None:
        bias_f32 = jnp.zeros((1, N), jnp.float32)
    else:
        assert bias.shape == (1, N), bias.shape
        bias_f32 = bias.astype(jnp.float32)

    # bf16 streams for the MXU operands; eps stays f32.
    x_bf16 = x.astype(jnp.bfloat16)
    w_bf16 = W.astype(jnp.bfloat16)

    tm = _pick_block(M, bm, (256, 8))
    tn = _pick_block(N, bn, (256, 128))
    tk = _pick_block(K, bk, (256, 128))
    grid = (M // tm, N // tn, K // tk)

    # Double-buffered VMEM footprint (bf16 x, bf16 W, f32 eps, f32 bias inputs
    # + f32 output); set the scoped limit above it but cap for v7x's 64 MiB.
    footprint = (2 * (tm * tk * 2 + tn * tk * (2 + 4) + tn * 4)
                 + 2 * tm * tn * 4)
    vmem_limit = int(min(max(2 * footprint + (4 << 20), 32 << 20), 48 << 20))

    cost = pl.CostEstimate(
        flops=2 * M * N * K,
        transcendentals=0,
        bytes_accessed=(x_bf16.size * 2 + w_bf16.size * 2 + eps.size * 4
                        + bias_f32.size * 4 + M * N * 4),
    )

    y_f32 = pl.pallas_call(
        _lin_var_unif_kernel,
        out_shape=jax.ShapeDtypeStruct((M, N), jnp.float32),
        grid_spec=pltpu.PrefetchScalarGridSpec(
            num_scalar_prefetch=0,
            grid=grid,
            in_specs=[
                pl.BlockSpec((tm, tk), lambda i, j, k: (i, k)),   # x   (bf16)
                pl.BlockSpec((tn, tk), lambda i, j, k: (j, k)),   # W   (bf16)
                pl.BlockSpec((tn, tk), lambda i, j, k: (j, k)),   # eps (f32)
                pl.BlockSpec((1, tn), lambda i, j, k: (0, j)),    # bias(f32)
            ],
            out_specs=pl.BlockSpec((tm, tn), lambda i, j, k: (i, j)),
        ),
        compiler_params=pltpu.CompilerParams(
            dimension_semantics=("parallel", "parallel", "arbitrary"),
            vmem_limit_bytes=vmem_limit,
        ),
        cost_estimate=cost,
    )(x_bf16, w_bf16, eps, bias_f32)

    y = y_f32 if out_dtype == jnp.float32 else y_f32.astype(out_dtype)
    if return_eps:
        return y, eps
    return y


def make_params(key, in_features, out_features, dtype=jnp.float32):
    """Parameter init mirroring reset_parameters(); bias drawn nonzero so the
    bias-add path is actually exercised by the correctness check."""
    stdv = 1.0 / math.sqrt(in_features)
    k_w, k_b = jax.random.split(key)
    W = jax.random.uniform(k_w, (out_features, in_features), dtype,
                           minval=-stdv, maxval=stdv)
    bias = stdv * jax.random.normal(k_b, (1, out_features), dtype)
    return W, bias


if __name__ == "__main__":
    import numpy as np

    batch = 8
    in_features = 512
    out_features = 256

    key = jax.random.PRNGKey(0)
    k_param, k_x, k_eps1, k_eps2 = jax.random.split(key, 4)
    W, bias = make_params(k_param, in_features, out_features)
    x = jax.random.normal(k_x, (batch, in_features), dtype=jnp.float32)

    def reference(x, W, bias, eps):
        # Host reference applying the same bf16 casts the kernel uses (bf16
        # products are exact in f32; only accumulation order/precision differs).
        xb = jnp.asarray(x, jnp.bfloat16).astype(jnp.float32)
        wb = jnp.asarray(W, jnp.bfloat16).astype(jnp.float32)
        weff = (wb * eps).astype(jnp.bfloat16).astype(jnp.float32)
        return (np.asarray(xb, np.float64) @ np.asarray(weff, np.float64).T
                + np.asarray(bias, np.float64))

    # Case 1: no rounding; bk=256 -> two K grid steps, exercising the
    # in-output accumulation (init / accumulate / bias-finalize) path.
    y, eps = linear_variance_unif(x, W, bias, k_eps1, rounding=0,
                                  return_eps=True, bk=256)
    y = jax.block_until_ready(y)
    assert y.shape == (batch, out_features)
    assert eps.shape == (out_features, in_features)
    assert bool(jnp.all((eps >= -0.5) & (eps < 0.5)))
    np.testing.assert_allclose(np.asarray(y), reference(x, W, bias, eps),
                               rtol=2e-3, atol=2e-3)

    # Case 2: rounding path (eps snapped to the 1/rounding grid); single K step.
    rnd = 4
    y2, eps2 = linear_variance_unif(x, W, bias, k_eps2, rounding=rnd,
                                    return_eps=True)
    jax.block_until_ready(y2)
    assert bool(jnp.allclose(eps2 * rnd, jnp.round(eps2 * rnd), atol=1e-5))
    np.testing.assert_allclose(np.asarray(y2), reference(x, W, bias, eps2),
                               rtol=2e-3, atol=2e-3)

    print("KERNEL_OK")
</pallas_src>

<mosaic_0001>
module attributes {stable_mosaic.version = 11 : i64} {
  func.func @_lin_var_unif_kernel(%arg0: i32, %arg1: i32, %arg2: i32, %arg3: memref<8x256xbf16, #tpu.memory_space<vmem>>, %arg4: memref<256x256xbf16, #tpu.memory_space<vmem>>, %arg5: memref<256x256xf32, #tpu.memory_space<vmem>>, %arg6: memref<1x256xf32, #tpu.memory_space<vmem>>, %arg7: memref<8x256xf32, #tpu.memory_space<vmem>>) attributes {dimension_semantics = [#tpu.dimension_semantics<parallel>, #tpu.dimension_semantics<parallel>, #tpu.dimension_semantics<arbitrary>], iteration_bounds = array<i64: 1, 1, 2>, scalar_prefetch = 0 : i64, scratch_operands = 0 : i64, tpu.core_type = #tpu.core_type<tc>, window_params = [{transform_indices = @transform_0, window_bounds = array<i64: 8, 256>}, {transform_indices = @transform_1, window_bounds = array<i64: 256, 256>}, {transform_indices = @transform_2, window_bounds = array<i64: 256, 256>}, {transform_indices = @transform_3, window_bounds = array<i64: 1, 256>}, {transform_indices = @transform_4, window_bounds = array<i64: 8, 256>}]} {
    %c0_i32 = arith.constant 0 : i32
    %0 = arith.cmpi eq, %arg2, %c0_i32 : i32
    %1 = arith.extui %0 : i1 to i32
    %c0_i32_0 = arith.constant 0 : i32
    %2 = arith.cmpi ne, %1, %c0_i32_0 : i32
    scf.if %2 {
      %cst_11 = arith.constant 0.000000e+00 : f32
      %16 = vector.broadcast %cst_11 : f32 to vector<8x256xf32>
      %c0_12 = arith.constant 0 : index
      %c0_13 = arith.constant 0 : index
      %17 = vector.load %arg7[%c0_12, %c0_13] : memref<8x256xf32, #tpu.memory_space<vmem>>, vector<8x256xf32>
      tpu.vector_store %arg7[%c0_12, %c0_13], %16 {strides = array<i32>} : memref<8x256xf32, #tpu.memory_space<vmem>>, vector<8x256xf32>,
    } else {
    }
    %c0 = arith.constant 0 : index
    %c0_1 = arith.constant 0 : index
    %3 = vector.load %arg4[%c0, %c0_1] : memref<256x256xbf16, #tpu.memory_space<vmem>>, vector<256x256xbf16>
    %c0_2 = arith.constant 0 : index
    %c0_3 = arith.constant 0 : index
    %4 = vector.load %arg5[%c0_2, %c0_3] : memref<256x256xf32, #tpu.memory_space<vmem>>, vector<256x256xf32>
    %5 = arith.extf %3 : vector<256x256xbf16> to vector<256x256xf32>
    %6 = arith.mulf %5, %4 : vector<256x256xf32>
    %7 = arith.truncf %6 : vector<256x256xf32> to vector<256x256xbf16>
    %c0_4 = arith.constant 0 : index
    %c0_5 = arith.constant 0 : index
    %8 = vector.load %arg7[%c0_4, %c0_5] : memref<8x256xf32, #tpu.memory_space<vmem>>, vector<8x256xf32>
    %c0_6 = arith.constant 0 : index
    %c0_7 = arith.constant 0 : index
    %9 = vector.load %arg3[%c0_6, %c0_7] : memref<8x256xbf16, #tpu.memory_space<vmem>>, vector<8x256xbf16>
    %cst = arith.constant dense<0.000000e+00> : vector<8x256xf32>
    %10 = tpu.matmul %9, %7, %cst {dimension_numbers = #tpu.dot_dimension_numbers<[1], [1], [0], [0], [0, 0, 1, 0], [], []>} : vector<8x256xbf16>, vector<256x256xbf16>, vector<8x256xf32> -> vector<8x256xf32>
    %11 = arith.addf %8, %10 : vector<8x256xf32>
    %c0_8 = arith.constant 0 : index
    %c0_9 = arith.constant 0 : index
    %12 = vector.load %arg7[%c0_8, %c0_9] : memref<8x256xf32, #tpu.memory_space<vmem>>, vector<8x256xf32>
    tpu.vector_store %arg7[%c0_8, %c0_9], %11 {strides = array<i32>} : memref<8x256xf32, #tpu.memory_space<vmem>>, vector<8x256xf32>,
    %c1_i32 = arith.constant 1 : i32
    %13 = arith.cmpi eq, %arg2, %c1_i32 : i32
    %14 = arith.extui %13 : i1 to i32
    %c0_i32_10 = arith.constant 0 : i32
    %15 = arith.cmpi ne, %14, %c0_i32_10 : i32
    scf.if %15 {
      %c0_11 = arith.constant 0 : index
      %c0_12 = arith.constant 0 : index
      %16 = vector.load %arg7[%c0_11, %c0_12] : memref<8x256xf32, #tpu.memory_space<vmem>>, vector<8x256xf32>
      %c0_13 = arith.constant 0 : index
      %c0_14 = arith.constant 0 : index
      %17 = vector.load %arg6[%c0_13, %c0_14] : memref<1x256xf32, #tpu.memory_space<vmem>>, vector<1x256xf32>
      %18 = vector.broadcast %17 : vector<1x256xf32> to vector<8x256xf32>
      %19 = arith.addf %16, %18 : vector<8x256xf32>
      %c0_15 = arith.constant 0 : index
      %c0_16 = arith.constant 0 : index
      %20 = vector.load %arg7[%c0_15, %c0_16] : memref<8x256xf32, #tpu.memory_space<vmem>>, vector<8x256xf32>
      tpu.vector_store %arg7[%c0_15, %c0_16], %19 {strides = array<i32>} : memref<8x256xf32, #tpu.memory_space<vmem>>, vector<8x256xf32>,
    } else {
    }
    return
  }
  func.func @transform_0(%arg0: i32, %arg1: i32, %arg2: i32) -> (i32, i32) {
    %c0_i32 = arith.constant 0 : i32
    return %arg0, %arg2 : i32, i32
  }
  func.func @transform_1(%arg0: i32, %arg1: i32, %arg2: i32) -> (i32, i32) {
    %c0_i32 = arith.constant 0 : i32
    return %arg1, %arg2 : i32, i32
  }
  func.func @transform_2(%arg0: i32, %arg1: i32, %arg2: i32) -> (i32, i32) {
    %c0_i32 = arith.constant 0 : i32
    return %arg1, %arg2 : i32, i32
  }
  func.func @transform_3(%arg0: i32, %arg1: i32, %arg2: i32) -> (i32, i32) {
    %c0_i32 = arith.constant 0 : i32
    %c0_i32_0 = arith.constant 0 : i32
    return %c0_i32, %arg1 : i32, i32
  }
  func.func @transform_4(%arg0: i32, %arg1: i32, %arg2: i32) -> (i32, i32) {
    %c0_i32 = arith.constant 0 : i32
    return %arg0, %arg1 : i32, i32
  }
}

</mosaic_0001>

<llo_original>
// kernel: tpu_custom_call.1
$region0: #{tpu_custom_call.1}
  #allocation0 [shape = 'u32[]', space=smem, size = 0x4, offset = 0x4, fixed_abs, tag = 'smem constant byte address 0x4 - core index']
  #allocation1 [shape = 'u32[144,128]{1,0:T(1,128)}', space=vmem, size = 0x12000, scoped, tag = 'internal scratch']
  %s0 = inlined_call_operand.hbm [shape: bf16[8,512], index: 0, kind: input, shape index: {}]
  %s1 = inlined_call_operand.hbm [shape: bf16[256,512], index: 1, kind: input, shape index: {}]
  %s2 = inlined_call_operand.hbm [shape: f32[256,512], index: 2, kind: input, shape index: {}]
  %s3 = inlined_call_operand.vmem [shape: f32[1,256], index: 3, kind: input, shape index: {}]
  %s4 = inlined_call_operand.hbm [shape: f32[8,256], index: 4, kind: output, shape index: {}]
  %s5 = sld [smem:[#allocation0]]
  $region69: #{tpu_custom_call.1} parent=0
    _
  %s7 = ssub.s32 1, %s5
  %s8 = scalar_select 0, %s7, %s5
  $region1: #{tpu_custom_call.1} parent=0
    #allocation2 [shape = 'u8[8192]{0}', space=vmem, size = 0x2000, scoped, tag = 'input window, operand 0']
    #allocation3 [shape = 's32[2]{0}', space=sflag, size = 0x8, scoped, tag = 'scoped memory for tpu_custom_call.1']
    #allocation4 [shape = 's32[2]{0}', space=sflag, size = 0x8, scoped, tag = 'scoped memory for tpu_custom_call.1']
    #allocation5 [shape = 'u8[262144]{0}', space=vmem, size = 0x40000, scoped, tag = 'input window, operand 1']
    #allocation6 [shape = 's32[2]{0}', space=sflag, size = 0x8, scoped, tag = 'scoped memory for tpu_custom_call.1']
    #allocation7 [shape = 'u8[524288]{0}', space=vmem, size = 0x80000, scoped, tag = 'input window, operand 2']
    #allocation8 [shape = 'u8[8192]{0}', space=vmem, size = 0x2000, scoped, tag = 'output window, operand 0, single buffered']
    %9 = vsyncpa [#allocation3], 0
    %s10 = scalar_lea.sflag [#allocation3], 1
    %11 = vsyncpa %s10, 0
    %12 = vsyncpa [#allocation6], 0
    %s13 = scalar_lea.sflag [#allocation6], 1
    %14 = vsyncpa %s13, 0
    %15 = vsyncpa [#allocation4], 0
    loop: start=0, step=1, limit=4
    $region2: #{tpu_custom_call.1} parent=1 // loop_pre_header
      _
    $region3: #{tpu_custom_call.1} parent=1 // loop_header
      %s17 = sphi 0, %s21
      %p18 = scmp.ge.s32.totalorder %s17, 4
      %s24 = sphi 0, %s43
      %s25 = sphi 0, %s39
      %s26 = sphi 0, %s35
      %s27 = sphi 0, %s24
      %s28 = sphi 0, %s25
      %s29 = sphi 0, %s26
      %s30 = sphi 0, %s27
      %s31 = sphi 0, %s28
      %s32 = sphi 0, %s29
      %s48 = sphi 0, %s50
      %s51 = sphi 0, %s48
      %s52 = sphi 0, %s51
      %s68 = sphi 0, %s52
      %s76 = sphi 0, %s78
      %s79 = sphi 0, %s76
      %s80 = sphi 0, %s79
      %s96 = sphi 0, %s80
      %s104 = sphi 0, %s106
      %s107 = sphi 0, %s104
      %s108 = sphi 0, %s107
      %s124 = sphi 0, %s108
      %s130 = sphi 0, %s132
      %s133 = sphi 0, %s130
      %s134 = sphi 0, %s133
      %s150 = sphi 0, %s134
      %s158 = sphi 0, %s160
      %s161 = sphi 0, %s158
      %s162 = sphi 0, %s161
      %s178 = sphi 0, %s162
    $region4: #{tpu_custom_call.1} parent=1 // loop_header_branch
      %20 = sbr.rel (%p18) target = $region8
    $region5: #{tpu_custom_call.1} parent=1 // loop_body
      %s22 = ssub.s32 %s17, 1
      %s23 = ssub.s32 %s17, 2
      %s33 = sadd.s32 1, %s26
      %p34 = scmp.ge.s32.totalorder %s33, 2
      %s35 = scalar_select %p34, 0, %s33
      %s36 = sadd.s32 1, %s25
      %s37 = scalar_select %p34, %s36, %s25
      %p38 = scmp.ge.s32.totalorder %s37, 1
      %s39 = scalar_select %p38, 0, %s37
      %s40 = sadd.s32 1, %s24
      %s41 = scalar_select %p38, %s40, %s24
      %p42 = scmp.ge.s32.totalorder %s41, 1
      %s43 = scalar_select %p42, 0, %s41
      %s44 = ssub.s32 %s24, %s43
      %s45 = ssub.s32 %s26, %s35
      %s46 = sor.u32 %s44, %s45
      %p47 = scmp.eq.s32.totalorder %s46, 0
      %s49 = sadd.s32 %s48, 1
      %s50 = scalar_select %p47, %s48, %s49
      %p53 = pneg %p47
      %p54 = scmp.eq.s32.totalorder %s17, 1
      %p55 = por %p53, %p54
      %p56 = scmp.ne.s32.totalorder %s48, %s51
      %p57 = scmp.eq.s32.totalorder %s17, 0
      %p58 = por %p56, %p57
      %p59 = scmp.ne.s32.totalorder %s48, %s51
      %p60 = scmp.eq.s32.totalorder %s22, 1
      %p61 = por %p59, %p60
      %p62 = scmp.ne.s32.totalorder %s51, %s52
      %p63 = scmp.eq.s32.totalorder %s22, 0
      %p64 = por %p62, %p63
      %p65 = scmp.ne.s32.totalorder %s51, %s52
      %p66 = scmp.eq.s32.totalorder %s23, 1
      %p67 = por %p65, %p66
      %p69 = scmp.ne.s32.totalorder %s52, %s68
      %p70 = scmp.eq.s32.totalorder %s23, 0
      %p71 = por %p69, %p70
      %s72 = ssub.s32 %s25, %s39
      %s73 = ssub.s32 %s26, %s35
      %s74 = sor.u32 %s72, %s73
      %p75 = scmp.eq.s32.totalorder %s74, 0
      %s77 = sadd.s32 %s76, 1
      %s78 = scalar_select %p75, %s76, %s77
      %p81 = pneg %p75
      %p82 = scmp.eq.s32.totalorder %s17, 1
      %p83 = por %p81, %p82
      %p84 = scmp.ne.s32.totalorder %s76, %s79
      %p85 = scmp.eq.s32.totalorder %s17, 0
      %p86 = por %p84, %p85
      %p87 = scmp.ne.s32.totalorder %s76, %s79
      %p88 = scmp.eq.s32.totalorder %s22, 1
      %p89 = por %p87, %p88
      %p90 = scmp.ne.s32.totalorder %s79, %s80
      %p91 = scmp.eq.s32.totalorder %s22, 0
      %p92 = por %p90, %p91
      %p93 = scmp.ne.s32.totalorder %s79, %s80
      %p94 = scmp.eq.s32.totalorder %s23, 1
      %p95 = por %p93, %p94
      %p97 = scmp.ne.s32.totalorder %s80, %s96
      %p98 = scmp.eq.s32.totalorder %s23, 0
      %p99 = por %p97, %p98
      %s100 = ssub.s32 %s25, %s39
      %s101 = ssub.s32 %s26, %s35
      %s102 = sor.u32 %s100, %s101
      %p103 = scmp.eq.s32.totalorder %s102, 0
      %s105 = sadd.s32 %s104, 1
      %s106 = scalar_select %p103, %s104, %s105
      %p109 = pneg %p103
      %p110 = scmp.eq.s32.totalorder %s17, 1
      %p111 = por %p109, %p110
      %p112 = scmp.ne.s32.totalorder %s104, %s107
      %p113 = scmp.eq.s32.totalorder %s17, 0
      %p114 = por %p112, %p113
      %p115 = scmp.ne.s32.totalorder %s104, %s107
      %p116 = scmp.eq.s32.totalorder %s22, 1
      %p117 = por %p115, %p116
      %p118 = scmp.ne.s32.totalorder %s107, %s108
      %p119 = scmp.eq.s32.totalorder %s22, 0
      %p120 = por %p118, %p119
      %p121 = scmp.ne.s32.totalorder %s107, %s108
      %p122 = scmp.eq.s32.totalorder %s23, 1
      %p123 = por %p121, %p122
      %p125 = scmp.ne.s32.totalorder %s108, %s124
      %p126 = scmp.eq.s32.totalorder %s23, 0
      %p127 = por %p125, %p126
      %s128 = ssub.s32 %s25, %s39
      %p129 = scmp.eq.s32.totalorder %s128, 0
      %s131 = sadd.s32 %s130, 1
      %s132 = scalar_select %p129, %s130, %s131
      %p135 = pneg %p129
      %p136 = scmp.eq.s32.totalorder %s17, 1
      %p137 = por %p135, %p136
      %p138 = scmp.ne.s32.totalorder %s130, %s133
      %p139 = scmp.eq.s32.totalorder %s17, 0
      %p140 = por %p138, %p139
      %p141 = scmp.ne.s32.totalorder %s130, %s133
      %p142 = scmp.eq.s32.totalorder %s22, 1
      %p143 = por %p141, %p142
      %p144 = scmp.ne.s32.totalorder %s133, %s134
      %p145 = scmp.eq.s32.totalorder %s22, 0
      %p146 = por %p144, %p145
      %p147 = scmp.ne.s32.totalorder %s133, %s134
      %p148 = scmp.eq.s32.totalorder %s23, 1
      %p149 = por %p147, %p148
      %p151 = scmp.ne.s32.totalorder %s134, %s150
      %p152 = scmp.eq.s32.totalorder %s23, 0
      %p153 = por %p151, %p152
      %s154 = ssub.s32 %s24, %s43
      %s155 = ssub.s32 %s25, %s39
      %s156 = sor.u32 %s154, %s155
      %p157 = scmp.eq.s32.totalorder %s156, 0
      %s159 = sadd.s32 %s158, 1
      %s160 = scalar_select %p157, %s158, %s159
      %p163 = pneg %p157
      %p164 = scmp.eq.s32.totalorder %s17, 1
      %p165 = por %p163, %p164
      %p166 = scmp.ne.s32.totalorder %s158, %s161
      %p167 = scmp.eq.s32.totalorder %s17, 0
      %p168 = por %p166, %p167
      %p169 = scmp.ne.s32.totalorder %s158, %s161
      %p170 = scmp.eq.s32.totalorder %s22, 1
      %p171 = por %p169, %p170
      %p172 = scmp.ne.s32.totalorder %s161, %s162
      %p173 = scmp.eq.s32.totalorder %s22, 0
      %p174 = por %p172, %p173
      %p175 = scmp.ne.s32.totalorder %s161, %s162
      %p176 = scmp.eq.s32.totalorder %s23, 1
      %p177 = por %p175, %p176
      %p179 = scmp.ne.s32.totalorder %s162, %s178
      %p180 = scmp.eq.s32.totalorder %s23, 0
      %p181 = por %p179, %p180
      %p182 = scmp.le.s32.totalorder 1, %s17
      %p183 = scmp.lt.s32.totalorder %s17, 3
      %p184 = pnand %p182, %p183
      %p185 = pneg %p184
      // Predicated region
      $region9: #{tpu_custom_call.1} parent=5 // pred_check
        _
      $region10: #{tpu_custom_call.1} parent=5 // pred_check_branch
        %187 = sbr.rel (%p184) target = $region12
      $region11: #{tpu_custom_call.1} parent=5 // pred_region
        %s188 = ssub.s32 %s17, 1
        // Predicated region
        $region13: #{tpu_custom_call.1} parent=11 // pred_check
          %p189 = pneg %p146
        $region14: #{tpu_custom_call.1} parent=11 // pred_check_branch
          %191 = sbr.rel (%p189) target = $region16
        $region15: #{tpu_custom_call.1} parent=11 // pred_region
          %s192 = smul.u32 2, %s28
          %p193 = scmp.lt.s32.totalorder %s192, 1
          %s194 = scalar_select %p193, %s192, 1
          %s195 = scalar_lea.vmem %s3, %s194
          %s196 = smul.u32 2, %s28
        $region16: #{tpu_custom_call.1} parent=11 // pred_fallthru
          _
      $region12: #{tpu_custom_call.1} parent=5 // pred_fallthru
        _
      %p197 = scmp.lt.s32.totalorder %s17, 2
      // Predicated region
      $region17: #{tpu_custom_call.1} parent=5 // pred_check
        %p198 = pneg %p197
      $region18: #{tpu_custom_call.1} parent=5 // pred_check_branch
        %200 = sbr.rel (%p198) target = $region20
      $region19: #{tpu_custom_call.1} parent=5 // pred_region
        // Predicated region
        $region21: #{tpu_custom_call.1} parent=19 // pred_check
          %p201 = pneg %p58
        $region22: #{tpu_custom_call.1} parent=19 // pred_check_branch
          %203 = sbr.rel (%p201) target = $region24
        $region23: #{tpu_custom_call.1} parent=19 // pred_region
          %s204 = sand.u32 %s48, 1
          %s205 = scalar_lea.sflag [#allocation3], %s204
          %s206 = sand.u32 %s48, 1
          %s207 = smul.addr %s206, 8
          %s208 = scalar_lea.vmem [#allocation2], %s207
          %s209 = smul.u32 2, %s26
          %s211 = ssub.s32 128, 128
          %212 = vsyncadd %s205, %s211
          %s213 = smul.addr %s24, 4
          %s214 = sadd.s32 %s209, %s213
          %s215 = smul.addr %s214, 64
          %s216 = scalar_lea.hbm %s0, %s215
          %s218 = sshll.u32 %s208, 4
          %s219 = int_to_ptr.vmem [resolvable:$true] %s218
          %221 = dma.hbm_to_vmem [thread:$0]  %s216, 128, %s219, %s205
        $region24: #{tpu_custom_call.1} parent=19 // pred_fallthru
          _
        // Predicated region
        $region25: #{tpu_custom_call.1} parent=19 // pred_check
          %p222 = pneg %p86
        $region26: #{tpu_custom_call.1} parent=19 // pred_check_branch
          %224 = sbr.rel (%p222) target = $region28
        $region27: #{tpu_custom_call.1} parent=19 // pred_region
          %s225 = sand.u32 %s17, 1
          %s226 = scalar_lea.sflag [#allocation6], %s225
          %s227 = sand.u32 %s76, 1
          %s228 = smul.addr %s227, 256
          %s229 = scalar_lea.vmem [#allocation5], %s228
          %s230 = smul.u32 32, %s25
          %s231 = smul.u32 2, %s26
          %s233 = ssub.s32 4096, 4096
          %234 = vsyncadd %s226, %s233
          %s235 = smul.addr %s230, 4
          %s236 = sadd.s32 %s231, %s235
          %s237 = smul.addr %s236, 64
          %s238 = scalar_lea.hbm %s1, %s237
          %s239 = sshll.u32 %s229, 4
          %s240 = int_to_ptr.vmem [resolvable:$true] %s239
          %245 = dma.hbm_to_vmem [thread:$0]  %s238, 4096, %s240, %s226, 256, 128, 8
        $region28: #{tpu_custom_call.1} parent=19 // pred_fallthru
          _
        // Predicated region
        $region29: #{tpu_custom_call.1} parent=19 // pred_check
          %p246 = pneg %p114
        $region30: #{tpu_custom_call.1} parent=19 // pred_check_branch
          %248 = sbr.rel (%p246) target = $region32
        $region31: #{tpu_custom_call.1} parent=19 // pred_region
          %s249 = sand.u32 %s17, 1
          %s250 = scalar_lea.sflag [#allocation6], %s249
          %s251 = sand.u32 %s104, 1
          %s252 = smul.addr %s251, 512
          %s253 = scalar_lea.vmem [#allocation7], %s252
          %s254 = smul.u32 32, %s25
          %s255 = smul.u32 2, %s26
          %s257 = ssub.s32 8192, 8192
          %258 = vsyncadd %s250, %s257
          %s259 = smul.addr %s254, 4
          %s260 = sadd.s32 %s255, %s259
          %s261 = smul.addr %s260, 128
          %s262 = scalar_lea.hbm %s2, %s261
          %s263 = sshll.u32 %s253, 4
          %s264 = int_to_ptr.vmem [resolvable:$true] %s263
          %269 = dma.hbm_to_vmem [thread:$0]  %s262, 8192, %s264, %s250, 512, 256, 16
        $region32: #{tpu_custom_call.1} parent=19 // pred_fallthru
          _
      $region20: #{tpu_custom_call.1} parent=5 // pred_fallthru
        _
      %p270 = scmp.le.s32.totalorder 1, %s17
      %p271 = scmp.lt.s32.totalorder %s17, 3
      %p272 = pnand %p270, %p271
      %p273 = pneg %p272
      // Predicated region
      $region33: #{tpu_custom_call.1} parent=5 // pred_check
        _
      $region34: #{tpu_custom_call.1} parent=5 // pred_check_branch
        %275 = sbr.rel (%p272) target = $region36
      $region35: #{tpu_custom_call.1} parent=5 // pred_region
        %s276 = ssub.s32 %s17, 1
        %s277 = sand.u32 %s51, 1
        %s278 = scalar_lea.sflag [#allocation3], %s277
        %s279 = sand.u32 %s51, 1
        %s280 = smul.addr %s279, 8
        %s281 = scalar_lea.vmem [#allocation2], %s280
        // Predicated region
        $region37: #{tpu_custom_call.1} parent=35 // pred_check
          %p282 = pneg %p64
        $region38: #{tpu_custom_call.1} parent=35 // pred_check_branch
          %284 = sbr.rel (%p282) target = $region40
        $region39: #{tpu_custom_call.1} parent=35 // pred_region
          %285 = dma.done %s278, 128
        $region40: #{tpu_custom_call.1} parent=35 // pred_fallthru
          _
        %s286 = sand.u32 %s22, 1
        %s287 = scalar_lea.sflag [#allocation6], %s286
        %s288 = sand.u32 %s79, 1
        %s289 = smul.addr %s288, 256
        %s290 = scalar_lea.vmem [#allocation5], %s289
        // Predicated region
        $region41: #{tpu_custom_call.1} parent=35 // pred_check
          %p291 = pneg %p92
        $region42: #{tpu_custom_call.1} parent=35 // pred_check_branch
          %293 = sbr.rel (%p291) target = $region44
        $region43: #{tpu_custom_call.1} parent=35 // pred_region
          %294 = dma.done %s287, 4096
        $region44: #{tpu_custom_call.1} parent=35 // pred_fallthru
          _
        %s295 = sand.u32 %s22, 1
        %s296 = scalar_lea.sflag [#allocation6], %s295
        %s297 = sand.u32 %s107, 1
        %s298 = smul.addr %s297, 512
        %s299 = scalar_lea.vmem [#allocation7], %s298
        // Predicated region
        $region45: #{tpu_custom_call.1} parent=35 // pred_check
          %p300 = pneg %p120
        $region46: #{tpu_custom_call.1} parent=35 // pred_check_branch
          %302 = sbr.rel (%p300) target = $region48
        $region47: #{tpu_custom_call.1} parent=35 // pred_region
          %303 = dma.done %s296, 8192
        $region48: #{tpu_custom_call.1} parent=35 // pred_fallthru
          _
        %s304 = sand.u32 %s51, 1
        %s305 = scalar_lea.sflag [#allocation3], %s304
        %s306 = sand.u32 %s51, 1
        %s307 = smul.addr %s306, 8
        %s308 = scalar_lea.vmem [#allocation2], %s307
        %p309 = pneg %p64
        %p310 = pneg %p61
        %s311 = sand.u32 %s22, 1
        %s312 = scalar_lea.sflag [#allocation6], %s311
        %s313 = sand.u32 %s79, 1
        %s314 = smul.addr %s313, 256
        %s315 = scalar_lea.vmem [#allocation5], %s314
        %p316 = pneg %p92
        %p317 = pneg %p89
        %s318 = sand.u32 %s22, 1
        %s319 = scalar_lea.sflag [#allocation6], %s318
        %s320 = sand.u32 %s107, 1
        %s321 = smul.addr %s320, 512
        %s322 = scalar_lea.vmem [#allocation7], %s321
        %p323 = pneg %p120
        %p324 = pneg %p117
        %s325 = smul.u32 2, %s28
        %p326 = scmp.lt.s32.totalorder %s325, 1
        %s327 = scalar_select %p326, %s325, 1
        %s328 = scalar_lea.vmem %s3, %s327
        %p329 = pneg %p146
        %p330 = pneg %p143
        %p331 = pneg %p174
        %p332 = pneg %p171
        %s333 = smul.u32 2, %s29
        %s334 = smul.u32 32, %s28
        %s335 = smul.u32 2, %s29
        %s336 = smul.u32 32, %s28
        %s337 = smul.u32 2, %s29
        %s338 = smul.u32 2, %s28
        %p339 = scmp.lt.s32.totalorder %s338, 1
        %s340 = scalar_select %p339, %s338, 1
        %s341 = scalar_lea.vmem %s3, %s340
        %s342 = smul.u32 2, %s28
        %s343 = smul.u32 2, %s28
        %p344 = scmp.eq.s32.totalorder %s29, 0
        // Predicated region
        $region49: #{tpu_custom_call.1} parent=35 // pred_check
          %p345 = pneg %p344
        $region50: #{tpu_custom_call.1} parent=35 // pred_check_branch
          %347 = sbr.rel (%p345) target = $region52
        $region51: #{tpu_custom_call.1} parent=35 // pred_region
          %348 = vst [vmem:[#allocation8] sm:$0xff] 0.0
          %349 = vst [vmem:[#allocation8 + $0x8] sm:$0xff] 0.0
        $region52: #{tpu_custom_call.1} parent=35 // pred_fallthru
          _
        %v350 = vld [vmem:[%s290] sm:$0xff]
        %v351 = vld [vmem:[%s290 + $0x8] sm:$0xff]
        %v352 = vld [vmem:[%s290 + $0x10] sm:$0xff]
        %v353 = vld [vmem:[%s290 + $0x18] sm:$0xff]
        %v354 = vld [vmem:[%s290 + $0x20] sm:$0xff]
        %v355 = vld [vmem:[%s290 + $0x28] sm:$0xff]
        %v356 = vld [vmem:[%s290 + $0x30] sm:$0xff]
        %v357 = vld [vmem:[%s290 + $0x38] sm:$0xff]
        %v358 = vld [vmem:[%s290 + $0x40] sm:$0xff]
        %v359 = vld [vmem:[%s290 + $0x48] sm:$0xff]
        %v360 = vld [vmem:[%s290 + $0x50] sm:$0xff]
        %v361 = vld [vmem:[%s290 + $0x58] sm:$0xff]
        %v362 = vld [vmem:[%s290 + $0x60] sm:$0xff]
        %v363 = vld [vmem:[%s290 + $0x68] sm:$0xff]
        %v364 = vld [vmem:[%s290 + $0x70] sm:$0xff]
        %v365 = vld [vmem:[%s290 + $0x78] sm:$0xff]
        %v366 = vld [vmem:[%s290 + $0x80] sm:$0xff]
        %v367 = vld [vmem:[%s290 + $0x88] sm:$0xff]
        %v368 = vld [vmem:[%s290 + $0x90] sm:$0xff]
        %v369 = vld [vmem:[%s290 + $0x98] sm:$0xff]
        %v370 = vld [vmem:[%s290 + $0xa0] sm:$0xff]
        %v371 = vld [vmem:[%s290 + $0xa8] sm:$0xff]
        %v372 = vld [vmem:[%s290 + $0xb0] sm:$0xff]
        %v373 = vld [vmem:[%s290 + $0xb8] sm:$0xff]
        %v374 = vld [vmem:[%s290 + $0xc0] sm:$0xff]
        %v375 = vld [vmem:[%s290 + $0xc8] sm:$0xff]
        %v376 = vld [vmem:[%s290 + $0xd0] sm:$0xff]
        %v377 = vld [vmem:[%s290 + $0xd8] sm:$0xff]
        %v378 = vld [vmem:[%s290 + $0xe0] sm:$0xff]
        %v379 = vld [vmem:[%s290 + $0xe8] sm:$0xff]
        %v380 = vld [vmem:[%s290 + $0xf0] sm:$0xff]
        %v381 = vld [vmem:[%s290 + $0xf8] sm:$0xff]
        %v382 = vld [vmem:[%s299] sm:$0xff]
        %v383 = vld [vmem:[%s299 + $0x8] sm:$0xff]
        %v384 = vld [vmem:[%s299 + $0x10] sm:$0xff]
        %v385 = vld [vmem:[%s299 + $0x18] sm:$0xff]
        %v386 = vld [vmem:[%s299 + $0x20] sm:$0xff]
        %v387 = vld [vmem:[%s299 + $0x28] sm:$0xff]
        %v388 = vld [vmem:[%s299 + $0x30] sm:$0xff]
        %v389 = vld [vmem:[%s299 + $0x38] sm:$0xff]
        %v390 = vld [vmem:[%s299 + $0x40] sm:$0xff]
        %v391 = vld [vmem:[%s299 + $0x48] sm:$0xff]
        %v392 = vld [vmem:[%s299 + $0x50] sm:$0xff]
        %v393 = vld [vmem:[%s299 + $0x58] sm:$0xff]
        %v394 = vld [vmem:[%s299 + $0x60] sm:$0xff]
        %v395 = vld [vmem:[%s299 + $0x68] sm:$0xff]
        %v396 = vld [vmem:[%s299 + $0x70] sm:$0xff]
        %v397 = vld [vmem:[%s299 + $0x78] sm:$0xff]
        %v398 = vld [vmem:[%s299 + $0x80] sm:$0xff]
        %v399 = vld [vmem:[%s299 + $0x88] sm:$0xff]
        %v400 = vld [vmem:[%s299 + $0x90] sm:$0xff]
        %v401 = vld [vmem:[%s299 + $0x98] sm:$0xff]
        %v402 = vld [vmem:[%s299 + $0xa0] sm:$0xff]
        %v403 = vld [vmem:[%s299 + $0xa8] sm:$0xff]
        %v404 = vld [vmem:[%s299 + $0xb0] sm:$0xff]
        %v405 = vld [vmem:[%s299 + $0xb8] sm:$0xff]
        %v406 = vld [vmem:[%s299 + $0xc0] sm:$0xff]
        %v407 = vld [vmem:[%s299 + $0xc8] sm:$0xff]
        %v408 = vld [vmem:[%s299 + $0xd0] sm:$0xff]
        %v409 = vld [vmem:[%s299 + $0xd8] sm:$0xff]
        %v410 = vld [vmem:[%s299 + $0xe0] sm:$0xff]
        %v411 = vld [vmem:[%s299 + $0xe8] sm:$0xff]
        %v412 = vld [vmem:[%s299 + $0xf0] sm:$0xff]
        %v413 = vld [vmem:[%s299 + $0xf8] sm:$0xff]
        %v414 = vld [vmem:[%s299 + $0x100] sm:$0xff]
        %v415 = vld [vmem:[%s299 + $0x108] sm:$0xff]
        %v416 = vld [vmem:[%s299 + $0x110] sm:$0xff]
        %v417 = vld [vmem:[%s299 + $0x118] sm:$0xff]
        %v418 = vld [vmem:[%s299 + $0x120] sm:$0xff]
        %v419 = vld [vmem:[%s299 + $0x128] sm:$0xff]
        %v420 = vld [vmem:[%s299 + $0x130] sm:$0xff]
        %v421 = vld [vmem:[%s299 + $0x138] sm:$0xff]
        %v422 = vld [vmem:[%s299 + $0x140] sm:$0xff]
        %v423 = vld [vmem:[%s299 + $0x148] sm:$0xff]
        %v424 = vld [vmem:[%s299 + $0x150] sm:$0xff]
        %v425 = vld [vmem:[%s299 + $0x158] sm:$0xff]
        %v426 = vld [vmem:[%s299 + $0x160] sm:$0xff]
        %v427 = vld [vmem:[%s299 + $0x168] sm:$0xff]
        %v428 = vld [vmem:[%s299 + $0x170] sm:$0xff]
        %v429 = vld [vmem:[%s299 + $0x178] sm:$0xff]
        %v430 = vld [vmem:[%s299 + $0x180] sm:$0xff]
        %v431 = vld [vmem:[%s299 + $0x188] sm:$0xff]
        %v432 = vld [vmem:[%s299 + $0x190] sm:$0xff]
        %v433 = vld [vmem:[%s299 + $0x198] sm:$0xff]
        %v434 = vld [vmem:[%s299 + $0x1a0] sm:$0xff]
        %v435 = vld [vmem:[%s299 + $0x1a8] sm:$0xff]
        %v436 = vld [vmem:[%s299 + $0x1b0] sm:$0xff]
        %v437 = vld [vmem:[%s299 + $0x1b8] sm:$0xff]
        %v438 = vld [vmem:[%s299 + $0x1c0] sm:$0xff]
        %v439 = vld [vmem:[%s299 + $0x1c8] sm:$0xff]
        %v440 = vld [vmem:[%s299 + $0x1d0] sm:$0xff]
        %v441 = vld [vmem:[%s299 + $0x1d8] sm:$0xff]
        %v442 = vld [vmem:[%s299 + $0x1e0] sm:$0xff]
        %v443 = vld [vmem:[%s299 + $0x1e8] sm:$0xff]
        %v444 = vld [vmem:[%s299 + $0x1f0] sm:$0xff]
        %v445 = vld [vmem:[%s299 + $0x1f8] sm:$0xff]
        %v446 = vunpack.c.l.bf16 %v350
        %v447 = vunpack.c.h.bf16 %v350
        %v448 = vunpack.c.l.bf16 %v351
        %v449 = vunpack.c.h.bf16 %v351
        %v450 = vunpack.c.l.bf16 %v352
        %v451 = vunpack.c.h.bf16 %v352
        %v452 = vunpack.c.l.bf16 %v353
        %v453 = vunpack.c.h.bf16 %v353
        %v454 = vunpack.c.l.bf16 %v354
        %v455 = vunpack.c.h.bf16 %v354
        %v456 = vunpack.c.l.bf16 %v355
        %v457 = vunpack.c.h.bf16 %v355
        %v458 = vunpack.c.l.bf16 %v356
        %v459 = vunpack.c.h.bf16 %v356
        %v460 = vunpack.c.l.bf16 %v357
        %v461 = vunpack.c.h.bf16 %v357
        %v462 = vunpack.c.l.bf16 %v358
        %v463 = vunpack.c.h.bf16 %v358
        %v464 = vunpack.c.l.bf16 %v359
        %v465 = vunpack.c.h.bf16 %v359
        %v466 = vunpack.c.l.bf16 %v360
        %v467 = vunpack.c.h.bf16 %v360
        %v468 = vunpack.c.l.bf16 %v361
        %v469 = vunpack.c.h.bf16 %v361
        %v470 = vunpack.c.l.bf16 %v362
        %v471 = vunpack.c.h.bf16 %v362
        %v472 = vunpack.c.l.bf16 %v363
        %v473 = vunpack.c.h.bf16 %v363
        %v474 = vunpack.c.l.bf16 %v364
        %v475 = vunpack.c.h.bf16 %v364
        %v476 = vunpack.c.l.bf16 %v365
        %v477 = vunpack.c.h.bf16 %v365
        %v478 = vunpack.c.l.bf16 %v366
        %v479 = vunpack.c.h.bf16 %v366
        %v480 = vunpack.c.l.bf16 %v367
        %v481 = vunpack.c.h.bf16 %v367
        %v482 = vunpack.c.l.bf16 %v368
        %v483 = vunpack.c.h.bf16 %v368
        %v484 = vunpack.c.l.bf16 %v369
        %v485 = vunpack.c.h.bf16 %v369
        %v486 = vunpack.c.l.bf16 %v370
        %v487 = vunpack.c.h.bf16 %v370
        %v488 = vunpack.c.l.bf16 %v371
        %v489 = vunpack.c.h.bf16 %v371
        %v490 = vunpack.c.l.bf16 %v372
        %v491 = vunpack.c.h.bf16 %v372
        %v492 = vunpack.c.l.bf16 %v373
        %v493 = vunpack.c.h.bf16 %v373
        %v494 = vunpack.c.l.bf16 %v374
        %v495 = vunpack.c.h.bf16 %v374
        %v496 = vunpack.c.l.bf16 %v375
        %v497 = vunpack.c.h.bf16 %v375
        %v498 = vunpack.c.l.bf16 %v376
        %v499 = vunpack.c.h.bf16 %v376
        %v500 = vunpack.c.l.bf16 %v377
        %v501 = vunpack.c.h.bf16 %v377
        %v502 = vunpack.c.l.bf16 %v378
        %v503 = vunpack.c.h.bf16 %v378
        %v504 = vunpack.c.l.bf16 %v379
        %v505 = vunpack.c.h.bf16 %v379
        %v506 = vunpack.c.l.bf16 %v380
        %v507 = vunpack.c.h.bf16 %v380
        %v508 = vunpack.c.l.bf16 %v381
        %v509 = vunpack.c.h.bf16 %v381
        %v510 = vmul.f32 %v446, %v382
        %v511 = vmul.f32 %v447, %v383
        %v512 = vmul.f32 %v448, %v384
        %v513 = vmul.f32 %v449, %v385
        %v514 = vmul.f32 %v450, %v386
        %v515 = vmul.f32 %v451, %v387
        %v516 = vmul.f32 %v452, %v388
        %v517 = vmul.f32 %v453, %v389
        %v518 = vmul.f32 %v454, %v390
        %v519 = vmul.f32 %v455, %v391
        %v520 = vmul.f32 %v456, %v392
        %v521 = vmul.f32 %v457, %v393
        %v522 = vmul.f32 %v458, %v394
        %v523 = vmul.f32 %v459, %v395
        %v524 = vmul.f32 %v460, %v396
        %v525 = vmul.f32 %v461, %v397
        %v526 = vmul.f32 %v462, %v398
        %v527 = vmul.f32 %v463, %v399
        %v528 = vmul.f32 %v464, %v400
        %v529 = vmul.f32 %v465, %v401
        %v530 = vmul.f32 %v466, %v402
        %v531 = vmul.f32 %v467, %v403
        %v532 = vmul.f32 %v468, %v404
        %v533 = vmul.f32 %v469, %v405
        %v534 = vmul.f32 %v470, %v406
        %v535 = vmul.f32 %v471, %v407
        %v536 = vmul.f32 %v472, %v408
        %v537 = vmul.f32 %v473, %v409
        %v538 = vmul.f32 %v474, %v410
        %v539 = vmul.f32 %v475, %v411
        %v540 = vmul.f32 %v476, %v412
        %v541 = vmul.f32 %v477, %v413
        %v542 = vmul.f32 %v478, %v414
        %v543 = vmul.f32 %v479, %v415
        %v544 = vmul.f32 %v480, %v416
        %v545 = vmul.f32 %v481, %v417
        %v546 = vmul.f32 %v482, %v418
        %v547 = vmul.f32 %v483, %v419
        %v548 = vmul.f32 %v484, %v420
        %v549 = vmul.f32 %v485, %v421
        %v550 = vmul.f32 %v486, %v422
        %v551 = vmul.f32 %v487, %v423
        %v552 = vmul.f32 %v488, %v424
        %v553 = vmul.f32 %v489, %v425
        %v554 = vmul.f32 %v490, %v426
        %v555 = vmul.f32 %v491, %v427
        %v556 = vmul.f32 %v492, %v428
        %v557 = vmul.f32 %v493, %v429
        %v558 = vmul.f32 %v494, %v430
        %v559 = vmul.f32 %v495, %v431
        %v560 = vmul.f32 %v496, %v432
        %v561 = vmul.f32 %v497, %v433
        %v562 = vmul.f32 %v498, %v434
        %v563 = vmul.f32 %v499, %v435
        %v564 = vmul.f32 %v500, %v436
        %v565 = vmul.f32 %v501, %v437
        %v566 = vmul.f32 %v502, %v438
        %v567 = vmul.f32 %v503, %v439
        %v568 = vmul.f32 %v504, %v440
        %v569 = vmul.f32 %v505, %v441
        %v570 = vmul.f32 %v506, %v442
        %v571 = vmul.f32 %v507, %v443
        %v572 = vmul.f32 %v508, %v444
        %v573 = vmul.f32 %v509, %v445
        %v574 = vpack.c.bf16 %v512, %v510
        %v575 = vpack.c.bf16 %v513, %v511
        %v576 = vpack.c.bf16 %v516, %v514
        %v577 = vpack.c.bf16 %v517, %v515
        %v578 = vpack.c.bf16 %v520, %v518
        %v579 = vpack.c.bf16 %v521, %v519
        %v580 = vpack.c.bf16 %v524, %v522
        %v581 = vpack.c.bf16 %v525, %v523
        %v582 = vpack.c.bf16 %v528, %v526
        %v583 = vpack.c.bf16 %v529, %v527
        %v584 = vpack.c.bf16 %v532, %v530
        %v585 = vpack.c.bf16 %v533, %v531
        %v586 = vpack.c.bf16 %v536, %v534
        %v587 = vpack.c.bf16 %v537, %v535
        %v588 = vpack.c.bf16 %v540, %v538
        %v589 = vpack.c.bf16 %v541, %v539
        %v590 = vpack.c.bf16 %v544, %v542
        %v591 = vpack.c.bf16 %v545, %v543
        %v592 = vpack.c.bf16 %v548, %v546
        %v593 = vpack.c.bf16 %v549, %v547
        %v594 = vpack.c.bf16 %v552, %v550
        %v595 = vpack.c.bf16 %v553, %v551
        %v596 = vpack.c.bf16 %v556, %v554
        %v597 = vpack.c.bf16 %v557, %v555
        %v598 = vpack.c.bf16 %v560, %v558
        %v599 = vpack.c.bf16 %v561, %v559
        %v600 = vpack.c.bf16 %v564, %v562
        %v601 = vpack.c.bf16 %v565, %v563
        %v602 = vpack.c.bf16 %v568, %v566
        %v603 = vpack.c.bf16 %v569, %v567
        %v604 = vpack.c.bf16 %v572, %v570
        %v605 = vpack.c.bf16 %v573, %v571
        %v606 = vld [vmem:[#allocation8] sm:$0xff]
        %v607 = vld [vmem:[#allocation8 + $0x8] sm:$0xff]
        %v608 = vld [vmem:[%s281] sm:$0xff]
        %v610 = vunpack.c.l.b16 %v608
        %v611 = vunpack.c.h.b16 %v608
        %v612 = vpack.c.b16 %v610, %v610
        %v613 = vpack.c.b16 %v611, %v611
        %616 = vmatprep.subr.bf16.mxu0 %v589
        %617 = vmatpush1.bf16.xpose.msra.mxu0 %v588
        %618 = vmatprep.subr.bf16.mxu0 %v587
        %619 = vmatpush1.bf16.xpose.msra.mxu0 %v586
        %620 = vmatprep.subr.bf16.mxu0 %v585
        %621 = vmatpush1.bf16.xpose.msra.mxu0 %v584
        %622 = vmatprep.subr.bf16.mxu0 %v583
        %623 = vmatpush1.bf16.xpose.msra.mxu0 %v582
        %624 = vmatprep.subr.bf16.mxu0 %v581
        %625 = vmatpush1.bf16.xpose.msra.mxu0 %v580
        %626 = vmatprep.subr.bf16.mxu0 %v579
        %627 = vmatpush1.bf16.xpose.msra.mxu0 %v578
        %628 = vmatprep.subr.bf16.mxu0 %v577
        %629 = vmatpush1.bf16.xpose.msra.mxu0 %v576
        %630 = vmatprep.subr.bf16.mxu0 %v575
        %631 = vmatpush1.bf16.xpose.msra.mxu0 %v574
        %632 = vmatprep.subr.bf16.mxu0 %v605
        %633 = vmatpush2.bf16.xpose.msra.mxu0 %v604
        %634 = vmatprep.subr.bf16.mxu0 %v603
        %635 = vmatpush2.bf16.xpose.msra.mxu0 %v602
        %636 = vmatprep.subr.bf16.mxu0 %v601
        %637 = vmatpush2.bf16.xpose.msra.mxu0 %v600
        %638 = vmatprep.subr.bf16.mxu0 %v599
        %639 = vmatpush2.bf16.xpose.msra.mxu0 %v598
        %640 = vmatprep.subr.bf16.mxu0 %v597
        %641 = vmatpush2.bf16.xpose.msra.mxu0 %v596
        %642 = vmatprep.subr.bf16.mxu0 %v595
        %643 = vmatpush2.bf16.xpose.msra.mxu0 %v594
        %644 = vmatprep.subr.bf16.mxu0 %v593
        %645 = vmatpush2.bf16.xpose.msra.mxu0 %v592
        %646 = vmatprep.subr.bf16.mxu0 %v591
        %647 = vmatpush2.bf16.xpose.msra.mxu0 %v590
        %648 = vmatprep.mubr.bf16.mxu0 %v613
        %649 = vmatmul.mubr.bf16.gmra.mxu0 %v612
        %v650 = vpop.f32.mrf.mxu0
        %v651 = vadd.f32 0.0, %v650
        %v652 = vpop.f32.mrf.mxu0
        %v653 = vadd.f32 0.0, %v652
        %v654 = vpop.f32.mrf.mxu0
        %v655 = vpop.f32.mrf.mxu0
        %656 = vdwg.mxu0
        %v657 = vadd.f32 %v606, %v651
        %v658 = vadd.f32 %v607, %v653
        %659 = vst [vmem:[#allocation8] sm:$0xff] %v657
        %660 = vst [vmem:[#allocation8 + $0x8] sm:$0xff] %v658
        %p661 = scmp.eq.s32.totalorder %s29, 1
        // Predicated region
        $region53: #{tpu_custom_call.1} parent=35 // pred_check
          %p662 = pneg %p661
        $region54: #{tpu_custom_call.1} parent=35 // pred_check_branch
          %664 = sbr.rel (%p662) target = $region56
        $region55: #{tpu_custom_call.1} parent=35 // pred_region
          %v665 = vld [vmem:[#allocation8] sm:$0xff]
          %v666 = vld [vmem:[#allocation8 + $0x8] sm:$0xff]
          %v667 = vld [vmem:[%s341] sm:$0x3]
          %v669 = vlaneseq
          %v670 = vshrl.u32 %v669, 7
          %v671 = vsub.s32 0, %v670
          %v672 = vrot.slane %v667, %v671
          %v673 = vlaneseq
          %v674 = vshrl.u32 %v673, 7
          %v675 = vsub.s32 1, %v674
          %v676 = vrot.slane %v667, %v675
          %v679 = vadd.f32 %v665, %v672
          %v680 = vadd.f32 %v666, %v676
          %681 = vst [vmem:[#allocation8] sm:$0xff] %v679
          %682 = vst [vmem:[#allocation8 + $0x8] sm:$0xff] %v680
        $region56: #{tpu_custom_call.1} parent=35 // pred_fallthru
          _
        // Predicated region
        $region57: #{tpu_custom_call.1} parent=35 // pred_check
          %p683 = pneg %p171
        $region58: #{tpu_custom_call.1} parent=35 // pred_check_branch
          %685 = sbr.rel (%p683) target = $region60
        $region59: #{tpu_custom_call.1} parent=35 // pred_region
          %s686 = smul.u32 2, %s28
          %s688 = ssub.s32 256, 256
          %689 = vsyncadd [#allocation4], %s688
          %s690 = smul.addr %s27, 2
          %s691 = sadd.s32 %s686, %s690
          %s692 = smul.addr %s691, 128
          %s693 = scalar_lea.hbm %s4, %s692
          %s695 = sshll.u32 [#allocation8], 4
          %s696 = int_to_ptr.vmem [resolvable:$true] %s695
          %698 = dma.vmem_to_hbm [thread:$0]  %s696, 256, %s693, [#allocation4]
        $region60: #{tpu_custom_call.1} parent=35 // pred_fallthru
          _
        // Predicated region
        $region61: #{tpu_custom_call.1} parent=35 // pred_check
          %p699 = pneg %p171
        $region62: #{tpu_custom_call.1} parent=35 // pred_check_branch
          %701 = sbr.rel (%p699) target = $region64
        $region63: #{tpu_custom_call.1} parent=35 // pred_region
          %702 = dma.done [#allocation4], 256
        $region64: #{tpu_custom_call.1} parent=35 // pred_fallthru
          _
      $region36: #{tpu_custom_call.1} parent=5 // pred_fallthru
        _
      %p703 = scmp.le.s32.totalorder 2, %s17
      // Predicated region
      $region65: #{tpu_custom_call.1} parent=5 // pred_check
        %p704 = pneg %p703
      $region66: #{tpu_custom_call.1} parent=5 // pred_check_branch
        %706 = sbr.rel (%p704) target = $region68
      $region67: #{tpu_custom_call.1} parent=5 // pred_region
        %s707 = ssub.s32 %s17, 2
      $region68: #{tpu_custom_call.1} parent=5 // pred_fallthru
        _
    $region6: #{tpu_custom_call.1} parent=1 // loop_footer
      %s21 = sadd.s32 1, %s17
    $region7: #{tpu_custom_call.1} parent=1 // loop_footer_branch
      %16 = sbr.rel target = $region3
    $region8: #{tpu_custom_call.1} parent=1 // loop_exit
      _
    %708 = vsyncpa [#allocation3], 1
    %s709 = scalar_lea.sflag [#allocation3], 1
    %710 = vsyncpa %s709, 1
    %711 = vsyncpa [#allocation6], 1
    %s712 = scalar_lea.sflag [#allocation6], 1
    %713 = vsyncpa %s712, 1
    %714 = vsyncpa [#allocation4], 1
    %s715 = scalar_lea.sflag [#allocation4], 1
    %716 = vsyncpa %s715, 1

</llo_original>
